<compile_context>
chip_gen: v7x
topology: tpu7x:2x2x1
jax: 0.10.0
libtpu: 0.0.40
codegen_flags: <defaults>
</compile_context>

<pallas_src>
import jax
import jax.numpy as jnp
from jax.experimental import pallas as pl
from jax.experimental.pallas import tpu as pltpu


def _bpr_kernel_neg(rc_ref, idx_ref, out_ref):
    """Per-row BPR loss: softplus(softmax[neg] - softmax[pos])."""
    x = rc_ref[...].astype(jnp.float32)                        # (tb, N)
    m = jnp.max(x, axis=-1, keepdims=True)                     # (tb, 1)
    e = jnp.exp(x - m)                                         # (tb, N)
    denom = jnp.sum(e, axis=-1, keepdims=True)                 # (tb, 1)

    idx = idx_ref[...]                                         # (tb, 2) int32
    tgt = idx[:, 0:1]                                          # (tb, 1)
    neg = idx[:, 1:2]                                          # (tb, 1)

    # Direct masked gathers of the two indexed columns (no dynamic gather on
    # TPU); single row reduce of (e_neg - e_pos).
    ids = jax.lax.broadcasted_iota(jnp.int32, x.shape, 1)      # (tb, N)
    diff = jnp.where(ids == neg, e, 0.0) - jnp.where(ids == tgt, e, 0.0)
    diff_e = jnp.sum(diff, axis=-1, keepdims=True)             # (tb, 1)

    # Normalize only the gathered column (no N-wide divide).
    out_ref[...] = jax.nn.softplus(diff_e / denom)


def _bpr_kernel_noneg(rc_ref, tgt_ref, out_ref):
    """Per-row NLL: -log(softmax[pos]) in log-sum-exp form."""
    x = rc_ref[...].astype(jnp.float32)                        # (tb, N)
    m = jnp.max(x, axis=-1, keepdims=True)                     # (tb, 1)
    e = jnp.exp(x - m)
    denom = jnp.sum(e, axis=-1, keepdims=True)                 # (tb, 1)

    ids = jax.lax.broadcasted_iota(jnp.int32, x.shape, 1)
    x_tgt = jnp.sum(jnp.where(ids == tgt_ref[...], x, 0.0),
                    axis=-1, keepdims=True)                    # (tb, 1)

    # -log(exp(x_tgt - m)/denom) == log(denom) + m - x_tgt
    out_ref[...] = jnp.log(denom) + (m - x_tgt)


def _pick_tile_b(batch_size, n_items, dtype_bytes):
    """Largest batch tile whose pipeline buffer stays ~12 MiB (dtype-aware)."""
    per_buffer_budget = 12 * 1024 * 1024                       # bytes per buffer
    tile_b = per_buffer_budget // max(1, n_items * dtype_bytes)
    # Keep >= 2 grid steps whenever possible so the "parallel" axis can be
    # sharded across both TensorCores on v7x (no-op on 1-TC chips).
    half_b = ((-(-batch_size // 2) + 7) // 8) * 8
    tile_b = min(tile_b, half_b)
    tile_b = max(8, (tile_b // 8) * 8)                         # sublane multiple
    return int(tile_b)


def bpr_loss(lamda, info_loss, l2_loss, result_click, target, neg_sample=None,
             *, tile_b=None):
    """Pallas implementation of BPRLoss.forward. Returns (rs_loss, click_loss)."""
    B, N = result_click.shape
    use_neg = neg_sample is not None
    dtype_bytes = jnp.dtype(result_click.dtype).itemsize

    if tile_b is None:
        tile_b = _pick_tile_b(B, N, dtype_bytes)
    tile_b = max(8, (int(tile_b) // 8) * 8)
    num_tiles = -(-B // tile_b)                                # ceil-div grid

    tgt = target.reshape(B, 1).astype(jnp.int32)
    if use_neg:
        neg = neg_sample.reshape(B, 1).astype(jnp.int32)
        idx = jnp.concatenate([tgt, neg], axis=1)              # (B, 2) merged
        idx_spec = pl.BlockSpec((tile_b, 2), lambda i: (i, 0))
        kernel = _bpr_kernel_neg
    else:
        idx = tgt                                              # (B, 1)
        idx_spec = pl.BlockSpec((tile_b, 1), lambda i: (i, 0))
        kernel = _bpr_kernel_noneg

    per_row = pl.pallas_call(
        kernel,
        out_shape=jax.ShapeDtypeStruct((B, 1), jnp.float32),
        grid_spec=pltpu.PrefetchScalarGridSpec(
            num_scalar_prefetch=0,
            grid=(num_tiles,),
            in_specs=[
                pl.BlockSpec((tile_b, N), lambda i: (i, 0)),   # logits tile
                idx_spec,                                      # tgt(/neg) cols
            ],
            out_specs=pl.BlockSpec((tile_b, 1), lambda i: (i, 0)),
        ),
        compiler_params=pltpu.CompilerParams(
            dimension_semantics=("parallel",),                 # both TCs on v7x
            vmem_limit_bytes=40 * 1024 * 1024,
        ),
    )(result_click, idx)

    # Final tiny reduction in JAX.
    click_loss = jnp.sum(per_row[:, 0]) / jnp.float32(B)
    rs_loss = click_loss + lamda * info_loss + l2_loss
    return rs_loss, click_loss


def _bpr_loss_ref(lamda, info_loss, l2_loss, result_click, target, neg_sample=None):
    """Pure-JAX reference mirroring the PyTorch module."""
    B = result_click.shape[0]
    sm = jax.nn.softmax(result_click.astype(jnp.float32), axis=1)
    pos = sm[jnp.arange(B), target.reshape(-1)]
    if neg_sample is None:
        click_loss = jnp.mean(-jnp.log(pos))
    else:
        neg = sm[jnp.arange(B), neg_sample.reshape(-1)]
        click_loss = jnp.mean(jax.nn.softplus(neg - pos))
    return click_loss + lamda * info_loss + l2_loss, click_loss


if __name__ == "__main__":
    key = jax.random.PRNGKey(0)
    k1, k2, k3, k4, k5, k6 = jax.random.split(key, 6)

    lamda = jnp.float32(0.1)
    info_loss = jnp.float32(0.5)
    l2_loss = jnp.float32(0.01)

    # --- f32 logits, B=16, N=128 (2 even tiles) ---------------------------
    B, N = 16, 128
    rc = jax.random.normal(k1, (B, N), dtype=jnp.float32)
    tgt = jax.random.randint(k2, (B,), 0, N, dtype=jnp.int32)
    neg = jax.random.randint(k3, (B, 1), 0, N, dtype=jnp.int32)

    rs, cl = bpr_loss(lamda, info_loss, l2_loss, rc, tgt, neg)
    jax.block_until_ready((rs, cl))
    rs_r, cl_r = _bpr_loss_ref(lamda, info_loss, l2_loss, rc, tgt, neg)
    assert jnp.allclose(cl, cl_r, atol=1e-5, rtol=1e-5)
    assert jnp.allclose(rs, rs_r, atol=1e-5, rtol=1e-5)

    rs2, cl2 = bpr_loss(lamda, info_loss, l2_loss, rc, tgt, None)
    jax.block_until_ready((rs2, cl2))
    rs2_r, cl2_r = _bpr_loss_ref(lamda, info_loss, l2_loss, rc, tgt, None)
    assert jnp.allclose(cl2, cl2_r, atol=1e-5, rtol=1e-5)
    assert jnp.allclose(rs2, rs2_r, atol=1e-5, rtol=1e-5)

    # --- bf16 logits, ragged batch B=13 (partial last tile) ---------------
    B2, N2 = 13, 128
    rc_bf = jax.random.normal(k4, (B2, N2), dtype=jnp.float32).astype(jnp.bfloat16)
    tgt2 = jax.random.randint(k5, (B2,), 0, N2, dtype=jnp.int32)
    neg2 = jax.random.randint(k6, (B2, 1), 0, N2, dtype=jnp.int32)

    rs3, cl3 = bpr_loss(lamda, info_loss, l2_loss, rc_bf, tgt2, neg2)
    jax.block_until_ready((rs3, cl3))
    rs3_r, cl3_r = _bpr_loss_ref(lamda, info_loss, l2_loss, rc_bf, tgt2, neg2)
    assert jnp.allclose(cl3, cl3_r, atol=1e-4, rtol=1e-4)
    assert jnp.allclose(rs3, rs3_r, atol=1e-4, rtol=1e-4)

    rs4, cl4 = bpr_loss(lamda, info_loss, l2_loss, rc_bf, tgt2, None)
    jax.block_until_ready((rs4, cl4))
    rs4_r, cl4_r = _bpr_loss_ref(lamda, info_loss, l2_loss, rc_bf, tgt2, None)
    assert jnp.allclose(cl4, cl4_r, atol=1e-4, rtol=1e-4)
    assert jnp.allclose(rs4, rs4_r, atol=1e-4, rtol=1e-4)

    print("KERNEL_OK")
</pallas_src>

<mosaic_0001>
module attributes {stable_mosaic.version = 11 : i64} {
  func.func @_bpr_kernel_neg(%arg0: i32, %arg1: memref<8x128xf32, #tpu.memory_space<vmem>>, %arg2: memref<8x2xi32, #tpu.memory_space<vmem>>, %arg3: memref<8x1xf32, #tpu.memory_space<vmem>>) attributes {dimension_semantics = [#tpu.dimension_semantics<parallel>], iteration_bounds = array<i64: 2>, scalar_prefetch = 0 : i64, scratch_operands = 0 : i64, tpu.core_type = #tpu.core_type<tc>, window_params = [{transform_indices = @transform_0, window_bounds = array<i64: 8, 128>}, {transform_indices = @transform_1, window_bounds = array<i64: 8, 2>}, {transform_indices = @transform_2, window_bounds = array<i64: 8, 1>}]} {
    %c0 = arith.constant 0 : index
    %c0_0 = arith.constant 0 : index
    %0 = vector.load %arg1[%c0, %c0_0] : memref<8x128xf32, #tpu.memory_space<vmem>>, vector<8x128xf32>
    %cst = arith.constant dense<0xFF800000> : vector<8xf32>
    %1 = vector.multi_reduction <maximumf>, %0, %cst [1] : vector<8x128xf32> to vector<8xf32>
    %2 = vector.shape_cast %1 : vector<8xf32> to vector<8x1xf32>
    %3 = vector.broadcast %2 : vector<8x1xf32> to vector<8x128xf32>
    %4 = arith.subf %0, %3 : vector<8x128xf32>
    %5 = math.exp %4 : vector<8x128xf32>
    %cst_1 = arith.constant dense<0.000000e+00> : vector<8xf32>
    %6 = vector.multi_reduction <add>, %5, %cst_1 [1] : vector<8x128xf32> to vector<8xf32>
    %7 = vector.shape_cast %6 : vector<8xf32> to vector<8x1xf32>
    %c0_2 = arith.constant 0 : index
    %c0_3 = arith.constant 0 : index
    %8 = vector.load %arg2[%c0_2, %c0_3] : memref<8x2xi32, #tpu.memory_space<vmem>>, vector<8x2xi32>
    %9 = vector.extract_strided_slice %8 {offsets = [0, 0], sizes = [8, 1], strides = [1, 1]} : vector<8x2xi32> to vector<8x1xi32>
    %10 = vector.extract_strided_slice %8 {offsets = [0, 1], sizes = [8, 1], strides = [1, 1]} : vector<8x2xi32> to vector<8x1xi32>
    %11 = tpu.iota {dimensions = array<i32: 1>} : vector<8x128xi32>
    %12 = vector.broadcast %10 : vector<8x1xi32> to vector<8x128xi32>
    %13 = arith.cmpi eq, %11, %12 : vector<8x128xi32>
    %cst_4 = arith.constant 0.000000e+00 : f32
    %14 = vector.broadcast %cst_4 : f32 to vector<8x128xf32>
    %15 = arith.select %13, %5, %14 : vector<8x128xi1>, vector<8x128xf32>
    %16 = vector.broadcast %9 : vector<8x1xi32> to vector<8x128xi32>
    %17 = arith.cmpi eq, %11, %16 : vector<8x128xi32>
    %cst_5 = arith.constant 0.000000e+00 : f32
    %18 = vector.broadcast %cst_5 : f32 to vector<8x128xf32>
    %19 = arith.select %17, %5, %18 : vector<8x128xi1>, vector<8x128xf32>
    %20 = arith.subf %15, %19 : vector<8x128xf32>
    %cst_6 = arith.constant dense<0.000000e+00> : vector<8xf32>
    %21 = vector.multi_reduction <add>, %20, %cst_6 [1] : vector<8x128xf32> to vector<8xf32>
    %22 = vector.shape_cast %21 : vector<8xf32> to vector<8x1xf32>
    %23 = arith.divf %22, %7 : vector<8x1xf32>
    %cst_7 = arith.constant 0.000000e+00 : f32
    %24 = vector.broadcast %cst_7 : f32 to vector<8x1xf32>
    %25 = arith.maximumf %23, %24 : vector<8x1xf32>
    %26 = vector.broadcast %cst_7 : f32 to vector<8x1xf32>
    %27 = arith.subf %23, %26 : vector<8x1xf32>
    %28 = arith.cmpf one, %27, %27 : vector<8x1xf32>
    %29 = vector.broadcast %cst_7 : f32 to vector<8x1xf32>
    %30 = arith.addf %23, %29 : vector<8x1xf32>
    %31 = math.absf %27 : vector<8x1xf32>
    %cst_8 = arith.constant 0.000000e+00 : f32
    %32 = vector.broadcast %cst_8 : f32 to vector<8x1xf32>
    %33 = arith.subf %32, %31 : vector<8x1xf32>
    %34 = math.exp %33 : vector<8x1xf32>
    %35 = math.log1p %34 : vector<8x1xf32>
    %36 = arith.addf %25, %35 : vector<8x1xf32>
    %37 = arith.select %28, %30, %36 : vector<8x1xi1>, vector<8x1xf32>
    %c0_9 = arith.constant 0 : index
    %c0_10 = arith.constant 0 : index
    %38 = vector.load %arg3[%c0_9, %c0_10] : memref<8x1xf32, #tpu.memory_space<vmem>>, vector<8x1xf32>
    tpu.vector_store %arg3[%c0_9, %c0_10], %37 {strides = array<i32>} : memref<8x1xf32, #tpu.memory_space<vmem>>, vector<8x1xf32>,
    return
  }
  func.func @transform_0(%arg0: i32) -> (i32, i32) {
    %c0_i32 = arith.constant 0 : i32
    %c0_i32_0 = arith.constant 0 : i32
    return %arg0, %c0_i32 : i32, i32
  }
  func.func @transform_1(%arg0: i32) -> (i32, i32) {
    %c0_i32 = arith.constant 0 : i32
    %c0_i32_0 = arith.constant 0 : i32
    return %arg0, %c0_i32 : i32, i32
  }
  func.func @transform_2(%arg0: i32) -> (i32, i32) {
    %c0_i32 = arith.constant 0 : i32
    %c0_i32_0 = arith.constant 0 : i32
    return %arg0, %c0_i32 : i32, i32
  }
}

</mosaic_0001>

<llo_original>
// kernel: tpu_custom_call.1
$region0: #{tpu_custom_call.1}
  #allocation0 [shape = 'u32[]', space=smem, size = 0x4, offset = 0x4, fixed_abs, tag = 'smem constant byte address 0x4 - core index']
  #allocation1 [shape = 'u32[144,128]{1,0:T(1,128)}', space=vmem, size = 0x12000, scoped, tag = 'internal scratch']
  %s0 = inlined_call_operand.vmem [shape: f32[16,128], index: 0, kind: input, shape index: {}]
  %s1 = inlined_call_operand.vmem [shape: s32[16,2], index: 1, kind: input, shape index: {}]
  %s2 = inlined_call_operand.vmem [shape: f32[16,1], index: 2, kind: output, shape index: {}]
  %s3 = sld [smem:[#allocation0]]
  $region41: #{tpu_custom_call.1} parent=0
    _
  %s5 = ssub.s32 1, %s3
  %s6 = scalar_select 0, %s5, %s3
  loop: start=0, step=1, limit=4
  $region2: #{tpu_custom_call.1} parent=0 // loop_pre_header
    _
  $region3: #{tpu_custom_call.1} parent=0 // loop_header
    %s8 = sphi 0, %s12
    %p9 = scmp.ge.s32.totalorder %s8, 4
    %s18 = sphi 0, %s20
    %s21 = sphi 0, %s18
    %s22 = sphi 0, %s21
    %s38 = sphi 0, %s22
    %s44 = sphi 0, %s46
    %s47 = sphi 0, %s44
    %s48 = sphi 0, %s47
    %s64 = sphi 0, %s48
    %s70 = sphi 0, %s72
    %s73 = sphi 0, %s70
    %s74 = sphi 0, %s73
    %s90 = sphi 0, %s74
  $region4: #{tpu_custom_call.1} parent=0 // loop_header_branch
    %11 = sbr.rel (%p9) target = $region8
  $region5: #{tpu_custom_call.1} parent=0 // loop_body
    %s13 = ssub.s32 %s8, 1
    %s14 = ssub.s32 %s8, 2
    %s15 = sadd.s32 %s8, 1
    %s16 = ssub.s32 %s8, %s15
    %p17 = scmp.eq.s32.totalorder %s16, 0
    %s19 = sadd.s32 %s18, 1
    %s20 = scalar_select %p17, %s18, %s19
    %p23 = pneg %p17
    %p24 = scmp.eq.s32.totalorder %s8, 1
    %p25 = por %p23, %p24
    %p26 = scmp.ne.s32.totalorder %s18, %s21
    %p27 = scmp.eq.s32.totalorder %s8, 0
    %p28 = por %p26, %p27
    %p29 = scmp.ne.s32.totalorder %s18, %s21
    %p30 = scmp.eq.s32.totalorder %s13, 1
    %p31 = por %p29, %p30
    %p32 = scmp.ne.s32.totalorder %s21, %s22
    %p33 = scmp.eq.s32.totalorder %s13, 0
    %p34 = por %p32, %p33
    %p35 = scmp.ne.s32.totalorder %s21, %s22
    %p36 = scmp.eq.s32.totalorder %s14, 1
    %p37 = por %p35, %p36
    %p39 = scmp.ne.s32.totalorder %s22, %s38
    %p40 = scmp.eq.s32.totalorder %s14, 0
    %p41 = por %p39, %p40
    %s42 = ssub.s32 %s8, %s15
    %p43 = scmp.eq.s32.totalorder %s42, 0
    %s45 = sadd.s32 %s44, 1
    %s46 = scalar_select %p43, %s44, %s45
    %p49 = pneg %p43
    %p50 = scmp.eq.s32.totalorder %s8, 1
    %p51 = por %p49, %p50
    %p52 = scmp.ne.s32.totalorder %s44, %s47
    %p53 = scmp.eq.s32.totalorder %s8, 0
    %p54 = por %p52, %p53
    %p55 = scmp.ne.s32.totalorder %s44, %s47
    %p56 = scmp.eq.s32.totalorder %s13, 1
    %p57 = por %p55, %p56
    %p58 = scmp.ne.s32.totalorder %s47, %s48
    %p59 = scmp.eq.s32.totalorder %s13, 0
    %p60 = por %p58, %p59
    %p61 = scmp.ne.s32.totalorder %s47, %s48
    %p62 = scmp.eq.s32.totalorder %s14, 1
    %p63 = por %p61, %p62
    %p65 = scmp.ne.s32.totalorder %s48, %s64
    %p66 = scmp.eq.s32.totalorder %s14, 0
    %p67 = por %p65, %p66
    %s68 = ssub.s32 %s8, %s15
    %p69 = scmp.eq.s32.totalorder %s68, 0
    %s71 = sadd.s32 %s70, 1
    %s72 = scalar_select %p69, %s70, %s71
    %p75 = pneg %p69
    %p76 = scmp.eq.s32.totalorder %s8, 1
    %p77 = por %p75, %p76
    %p78 = scmp.ne.s32.totalorder %s70, %s73
    %p79 = scmp.eq.s32.totalorder %s8, 0
    %p80 = por %p78, %p79
    %p81 = scmp.ne.s32.totalorder %s70, %s73
    %p82 = scmp.eq.s32.totalorder %s13, 1
    %p83 = por %p81, %p82
    %p84 = scmp.ne.s32.totalorder %s73, %s74
    %p85 = scmp.eq.s32.totalorder %s13, 0
    %p86 = por %p84, %p85
    %p87 = scmp.ne.s32.totalorder %s73, %s74
    %p88 = scmp.eq.s32.totalorder %s14, 1
    %p89 = por %p87, %p88
    %p91 = scmp.ne.s32.totalorder %s74, %s90
    %p92 = scmp.eq.s32.totalorder %s14, 0
    %p93 = por %p91, %p92
    %p94 = scmp.le.s32.totalorder 1, %s8
    %p95 = scmp.lt.s32.totalorder %s8, 3
    %p96 = pnand %p94, %p95
    %p97 = pneg %p96
    // Predicated region
    $region9: #{tpu_custom_call.1} parent=5 // pred_check
      _
    $region10: #{tpu_custom_call.1} parent=5 // pred_check_branch
      %99 = sbr.rel (%p96) target = $region12
    $region11: #{tpu_custom_call.1} parent=5 // pred_region
      %s100 = ssub.s32 %s8, 1
    $region12: #{tpu_custom_call.1} parent=5 // pred_fallthru
      _
    %p101 = scmp.lt.s32.totalorder %s8, 2
    // Predicated region
    $region13: #{tpu_custom_call.1} parent=5 // pred_check
      %p102 = pneg %p101
    $region14: #{tpu_custom_call.1} parent=5 // pred_check_branch
      %104 = sbr.rel (%p102) target = $region16
    $region15: #{tpu_custom_call.1} parent=5 // pred_region
      // Predicated region
      $region17: #{tpu_custom_call.1} parent=15 // pred_check
        %p105 = pneg %p28
      $region18: #{tpu_custom_call.1} parent=15 // pred_check_branch
        %107 = sbr.rel (%p105) target = $region20
      $region19: #{tpu_custom_call.1} parent=15 // pred_region
        %p108 = scmp.lt.s32.totalorder %s8, 1
        %s109 = scalar_select %p108, %s8, 1
        %s110 = smul.addr %s109, 8
        %s111 = scalar_lea.vmem %s0, %s110
      $region20: #{tpu_custom_call.1} parent=15 // pred_fallthru
        _
      // Predicated region
      $region21: #{tpu_custom_call.1} parent=15 // pred_check
        %p112 = pneg %p54
      $region22: #{tpu_custom_call.1} parent=15 // pred_check_branch
        %114 = sbr.rel (%p112) target = $region24
      $region23: #{tpu_custom_call.1} parent=15 // pred_region
        %p115 = scmp.lt.s32.totalorder %s8, 1
        %s116 = scalar_select %p115, %s8, 1
        %s117 = smul.addr %s116, 8
        %s118 = scalar_lea.vmem %s1, %s117
      $region24: #{tpu_custom_call.1} parent=15 // pred_fallthru
        _
    $region16: #{tpu_custom_call.1} parent=5 // pred_fallthru
      _
    %p119 = scmp.le.s32.totalorder 1, %s8
    %p120 = scmp.lt.s32.totalorder %s8, 3
    %p121 = pnand %p119, %p120
    %p122 = pneg %p121
    // Predicated region
    $region25: #{tpu_custom_call.1} parent=5 // pred_check
      _
    $region26: #{tpu_custom_call.1} parent=5 // pred_check_branch
      %124 = sbr.rel (%p121) target = $region28
    $region27: #{tpu_custom_call.1} parent=5 // pred_region
      %s125 = ssub.s32 %s8, 1
      %p126 = scmp.lt.s32.totalorder %s13, 1
      %s127 = scalar_select %p126, %s13, 1
      %s128 = smul.addr %s127, 8
      %s129 = scalar_lea.vmem %s0, %s128
      %p130 = pneg %p34
      %p131 = pneg %p31
      %p132 = scmp.lt.s32.totalorder %s13, 1
      %s133 = scalar_select %p132, %s13, 1
      %s134 = smul.addr %s133, 8
      %s135 = scalar_lea.vmem %s1, %s134
      %p136 = pneg %p60
      %p137 = pneg %p57
      %p138 = pneg %p86
      %p139 = pneg %p83
      %p140 = scmp.lt.s32.totalorder %s13, 1
      %s141 = scalar_select %p140, %s13, 1
      %s142 = smul.addr %s141, 8
      %s143 = scalar_lea.vmem %s2, %s142
      %p144 = scmp.lt.s32.totalorder %s13, 1
      %s145 = scalar_select %p144, %s13, 1
      %s146 = smul.addr %s145, 8
      %s147 = scalar_lea.vmem %s0, %s146
      %p148 = scmp.lt.s32.totalorder %s13, 1
      %s149 = scalar_select %p148, %s13, 1
      %s150 = smul.addr %s149, 8
      %s151 = scalar_lea.vmem %s1, %s150
      %p152 = scmp.lt.s32.totalorder %s13, 1
      %s153 = scalar_select %p152, %s13, 1
      %s154 = smul.addr %s153, 8
      %s155 = scalar_lea.vmem %s2, %s154
      %v156 = vld [vmem:[%s147] sm:$0xff]
      %157 = vmax.xlane.f32.xlu0 %v156
      %v158 = vpop.xlane.xlu0 %157
      %v159 = vsub.f32 %v156, %v158
      %v160 = vmul.f32 %v159, 1.442695
      %v161 = vpow.pop %v160
      %162 = vadd.xlane.f32.xlu0 %v161
      %v163 = vpop.xlane.xlu0 %162
      %v164 = vld [vmem:[%s151] sm:$0xff]
      %v165 = vlaneseq
      %v166 = vand.u32 %v165, 127
      %167 = vset.pattern.permute.xlu0 1
      %168 = vperm.xlu0 %167, %v164
      %v169 = vpop.permute.xlu0 %168
      %vm170 = vcmp.eq.s32.totalorder %v166, %v169
      %v171 = vsel %vm170, %v161, 0.0
      %172 = vset.pattern.permute.xlu0 0
      %173 = vperm.xlu0 %172, %v164
      %v174 = vpop.permute.xlu0 %173
      %vm175 = vcmp.eq.s32.totalorder %v166, %v174
      %v176 = vsel %vm175, %v161, 0.0
      %v177 = vsub.f32 %v171, %v176
      %178 = vadd.xlane.f32.xlu0 %v177
      %v179 = vpop.xlane.xlu0 %178
      %v180 = vrcp.pop %v163
      %v181 = vmul.f32 %v179, %v180
      %v182 = vmax.f32 %v181, 0.0
      %vm183 = vcmp.ne.f32.partialorder %v181, %v181
      %v184 = vadd.f32 %v181, 0.0
      %v185 = vand.u32 2147483647, %v181
      %v186 = vsub.f32 0.0, %v185
      %v187 = vmul.f32 %v186, 1.442695
      %v188 = vpow.pop %v187
      %v189 = vadd.f32 %v188, 1.0
      %v190 = vlog2.pop %v189
      %v191 = vmul.f32 %v190, 0.6931472
      %v192 = vmul.f32 -0.5, %v188
      %v193 = vadd.f32 %v192, 1.0
      %v194 = vmul.f32 %v193, %v188
      %v195 = vand.u32 2147483647, %v188
      %vm196 = vcmp.lt.f32.partialorder %v195, 0.0004427343
      %v197 = vsel %vm196, %v194, %v191
      %v198 = vadd.f32 %v182, %v197
      %v199 = vsel %vm183, %v184, %v198
      %vm200 = vcmask 7168
      %201 = vst.msk [vmem:[%s155] sm:$0xff] %vm200, %v199
      %p202 = scmp.lt.s32.totalorder %s13, 1
      %s203 = scalar_select %p202, %s13, 1
      %s204 = smul.addr %s203, 8
      %s205 = scalar_lea.vmem %s2, %s204
      // Predicated region
      $region29: #{tpu_custom_call.1} parent=27 // pred_check
        %p206 = pneg %p83
      $region30: #{tpu_custom_call.1} parent=27 // pred_check_branch
        %208 = sbr.rel (%p206) target = $region32
      $region31: #{tpu_custom_call.1} parent=27 // pred_region
        _
      $region32: #{tpu_custom_call.1} parent=27 // pred_fallthru
        _
    $region28: #{tpu_custom_call.1} parent=5 // pred_fallthru
      _
    %p209 = scmp.le.s32.totalorder 2, %s8
    // Predicated region
    $region33: #{tpu_custom_call.1} parent=5 // pred_check
      %p210 = pneg %p209
    $region34: #{tpu_custom_call.1} parent=5 // pred_check_branch
      %212 = sbr.rel (%p210) target = $region36
    $region35: #{tpu_custom_call.1} parent=5 // pred_region
      %s213 = ssub.s32 %s8, 2
      // Predicated region
      $region37: #{tpu_custom_call.1} parent=35 // pred_check
        %p214 = pneg %p89
      $region38: #{tpu_custom_call.1} parent=35 // pred_check_branch
        %216 = sbr.rel (%p214) target = $region40
      $region39: #{tpu_custom_call.1} parent=35 // pred_region
        %p217 = scmp.lt.s32.totalorder %s14, 1
        %s218 = scalar_select %p217, %s14, 1
        %s219 = smul.addr %s218, 8
        %s220 = scalar_lea.vmem %s2, %s219
      $region40: #{tpu_custom_call.1} parent=35 // pred_fallthru
        _
    $region36: #{tpu_custom_call.1} parent=5 // pred_fallthru
      _
  $region6: #{tpu_custom_call.1} parent=0 // loop_footer
    %s12 = sadd.s32 1, %s8
  $region7: #{tpu_custom_call.1} parent=0 // loop_footer_branch
    %7 = sbr.rel target = $region3
  $region8: #{tpu_custom_call.1} parent=0 // loop_exit
    _

</llo_original>
